<compile_context>
chip_gen: v7x
topology: tpu7x:2x2x1
jax: 0.10.0
libtpu: 0.0.40
codegen_flags: <defaults>
</compile_context>

<pallas_src>
import jax
import jax.numpy as jnp
from jax.experimental import pallas as pl
from jax.experimental.pallas import tpu as pltpu


def _head_kernel(x_ref, w1_ref, b1_ref, w2_ref, b2_ref, o_ref):
    # Dropout is the identity at inference, so the hot path is:
    #   tanh(x @ W1 + b1) @ W2 + b2
    x = x_ref[...]                                                   # (TB, H)  bf16
    h = jnp.dot(x, w1_ref[...], preferred_element_type=jnp.float32)  # (TB, H)  f32 acc
    h = jnp.tanh(h + b1_ref[...])                                    # f32 epilogue (EUP)
    out = jnp.dot(h.astype(w2_ref.dtype), w2_ref[...],
                  preferred_element_type=jnp.float32)                # (TB, Lp) f32 acc
    o_ref[...] = (out + b2_ref[...]).astype(o_ref.dtype)


def roberta_classification_head(x, w_dense, b_dense, w_out, b_out,
                                *, block_b=512, matmul_dtype=jnp.bfloat16):
    """x: [B, H]; w_dense: [H, H]; b_dense: [H]; w_out: [H, L]; b_out: [L]."""
    B, H = x.shape
    L = w_out.shape[1]
    out_dtype = x.dtype

    LANE = 128
    SUB = 16  # sublane alignment that is safe for both f32 (8) and bf16 (16)

    # Lane-pad the classifier output dimension to a multiple of 128.
    Lp = max(LANE, ((L + LANE - 1) // LANE) * LANE)
    # Batch tile: multiple of 16 sublanes, capped at block_b rows.
    TB = min(block_b, ((B + SUB - 1) // SUB) * SUB)
    # Pad batch up to a multiple of the tile size.
    Bp = ((B + TB - 1) // TB) * TB

    x_p = x if Bp == B else jnp.pad(x, ((0, Bp - B), (0, 0)))
    x_p = x_p.astype(matmul_dtype)
    w1 = w_dense.astype(matmul_dtype)
    w2 = jnp.pad(w_out, ((0, 0), (0, Lp - L))).astype(matmul_dtype)
    b1 = b_dense.reshape(1, H).astype(jnp.float32)
    b2 = jnp.pad(b_out, (0, Lp - L)).reshape(1, Lp).astype(jnp.float32)

    # HBM traffic estimate (weights read once; x/out streamed per tile).
    bytes_accessed = (Bp * H * 2            # x tiles (bf16)
                      + H * H * 2           # W1 (bf16, resident)
                      + H * Lp * 2          # W2 (bf16, resident)
                      + H * 4 + Lp * 4      # biases
                      + Bp * Lp * 4)        # output (f32)

    # VMEM budget: double-buffered x / out tiles + resident weights, with
    # headroom; clamp to v7x's 64 MiB physical VMEM.
    vmem_need = 2 * (2 * TB * H * 2            # x tiles (bf16, 2 buffers)
                     + 2 * TB * Lp * 4         # out tiles (f32, 2 buffers)
                     + H * H * 2 + H * Lp * 2  # weights
                     + H * 4 + Lp * 4          # biases
                     + TB * H * 4)             # f32 intermediate 'h'
    vmem_limit = int(min(max(vmem_need, 16 << 20), 64 << 20))

    out = pl.pallas_call(
        _head_kernel,
        out_shape=jax.ShapeDtypeStruct((Bp, Lp), jnp.float32),
        grid_spec=pltpu.PrefetchScalarGridSpec(
            num_scalar_prefetch=0,
            grid=(Bp // TB,),
            in_specs=[
                pl.BlockSpec((TB, H), lambda i: (i, 0)),   # x tile, pipelined over batch
                pl.BlockSpec((H, H), lambda i: (0, 0)),    # W1 resident
                pl.BlockSpec((1, H), lambda i: (0, 0)),    # b1 resident
                pl.BlockSpec((H, Lp), lambda i: (0, 0)),   # W2 (lane-padded) resident
                pl.BlockSpec((1, Lp), lambda i: (0, 0)),   # b2 (lane-padded) resident
            ],
            out_specs=pl.BlockSpec((TB, Lp), lambda i: (i, 0)),
        ),
        compiler_params=pltpu.CompilerParams(
            dimension_semantics=("parallel",),             # shards batch tiles on v7x's 2 TCs
            vmem_limit_bytes=vmem_limit,
        ),
        cost_estimate=pl.CostEstimate(
            flops=2 * Bp * H * (H + Lp),
            transcendentals=Bp * H,
            bytes_accessed=bytes_accessed,
        ),
    )(x_p, w1, b1, w2, b2)

    # Strip batch padding and lane padding; return in the input dtype.
    return out[:B, :L].astype(out_dtype)


def reference_bf16(x, w_dense, b_dense, w_out, b_out):
    """Pure-JAX reference using the same bf16-operand / f32-accum arithmetic."""
    xb = x.astype(jnp.bfloat16)
    w1 = w_dense.astype(jnp.bfloat16)
    w2 = w_out.astype(jnp.bfloat16)
    h = jnp.dot(xb, w1, preferred_element_type=jnp.float32) + b_dense
    h = jnp.tanh(h)
    return jnp.dot(h.astype(jnp.bfloat16), w2,
                   preferred_element_type=jnp.float32) + b_out


def reference_f32(x, w_dense, b_dense, w_out, b_out):
    h = jnp.tanh(x @ w_dense + b_dense)
    return h @ w_out + b_out


if __name__ == "__main__":
    hidden_size = 32
    num_labels = 4
    batch = 2
    hidden_dropout_prob = 0.1  # unused at inference (dropout == identity)

    key = jax.random.PRNGKey(0)
    k_x, k_w1, k_b1, k_w2, k_b2 = jax.random.split(key, 5)

    x = jax.random.normal(k_x, (batch, hidden_size), dtype=jnp.float32)
    # Deterministic synthetic parameters (shapes follow nn.Linear in __init__),
    # stored transposed as [in, out].
    w_dense = jax.random.normal(k_w1, (hidden_size, hidden_size), jnp.float32) * 0.05
    b_dense = jax.random.normal(k_b1, (hidden_size,), jnp.float32) * 0.01
    w_out = jax.random.normal(k_w2, (hidden_size, num_labels), jnp.float32) * 0.05
    b_out = jax.random.normal(k_b2, (num_labels,), jnp.float32) * 0.01

    out = roberta_classification_head(x, w_dense, b_dense, w_out, b_out)
    jax.block_until_ready(out)
    assert out.shape == (batch, num_labels)

    # Exact-arithmetic check against a bf16-matched reference ...
    ref_bf16 = reference_bf16(x, w_dense, b_dense, w_out, b_out)
    assert jnp.allclose(out, ref_bf16, atol=5e-3, rtol=5e-3)
    # ... and a looser check against the full-f32 PyTorch-equivalent math
    # (bf16 MXU operands introduce ~1e-3-level differences by design).
    ref_f32 = reference_f32(x, w_dense, b_dense, w_out, b_out)
    assert jnp.allclose(out, ref_f32, atol=3e-2, rtol=3e-2)

    print("KERNEL_OK")
</pallas_src>

<mosaic_0001>
module attributes {stable_mosaic.version = 11 : i64} {
  func.func @_head_kernel(%arg0: i32, %arg1: memref<16x32xbf16, #tpu.memory_space<vmem>>, %arg2: memref<32x32xbf16, #tpu.memory_space<vmem>>, %arg3: memref<1x32xf32, #tpu.memory_space<vmem>>, %arg4: memref<32x128xbf16, #tpu.memory_space<vmem>>, %arg5: memref<1x128xf32, #tpu.memory_space<vmem>>, %arg6: memref<16x128xf32, #tpu.memory_space<vmem>>) attributes {dimension_semantics = [#tpu.dimension_semantics<parallel>], iteration_bounds = array<i64: 1>, scalar_prefetch = 0 : i64, scratch_operands = 0 : i64, tpu.core_type = #tpu.core_type<tc>, window_params = [{transform_indices = @transform_0, window_bounds = array<i64: 16, 32>}, {pipeline_mode = #tpu.pipeline_mode<synchronous>, transform_indices = @transform_1, window_bounds = array<i64: 32, 32>}, {pipeline_mode = #tpu.pipeline_mode<synchronous>, transform_indices = @transform_2, window_bounds = array<i64: 1, 32>}, {pipeline_mode = #tpu.pipeline_mode<synchronous>, transform_indices = @transform_3, window_bounds = array<i64: 32, 128>}, {pipeline_mode = #tpu.pipeline_mode<synchronous>, transform_indices = @transform_4, window_bounds = array<i64: 1, 128>}, {transform_indices = @transform_5, window_bounds = array<i64: 16, 128>}]} {
    %c0 = arith.constant 0 : index
    %c0_0 = arith.constant 0 : index
    %0 = vector.load %arg1[%c0, %c0_0] : memref<16x32xbf16, #tpu.memory_space<vmem>>, vector<16x32xbf16>
    %c0_1 = arith.constant 0 : index
    %c0_2 = arith.constant 0 : index
    %1 = vector.load %arg2[%c0_1, %c0_2] : memref<32x32xbf16, #tpu.memory_space<vmem>>, vector<32x32xbf16>
    %cst = arith.constant dense<0.000000e+00> : vector<16x32xf32>
    %2 = tpu.matmul %0, %1, %cst {dimension_numbers = #tpu.dot_dimension_numbers<[1], [0], [0], [1], [0, 0, 1, 1], [], []>} : vector<16x32xbf16>, vector<32x32xbf16>, vector<16x32xf32> -> vector<16x32xf32>
    %c0_3 = arith.constant 0 : index
    %c0_4 = arith.constant 0 : index
    %3 = vector.load %arg3[%c0_3, %c0_4] : memref<1x32xf32, #tpu.memory_space<vmem>>, vector<1x32xf32>
    %4 = vector.broadcast %3 : vector<1x32xf32> to vector<16x32xf32>
    %5 = arith.addf %2, %4 : vector<16x32xf32>
    %6 = math.tanh %5 : vector<16x32xf32>
    %7 = arith.truncf %6 : vector<16x32xf32> to vector<16x32xbf16>
    %c0_5 = arith.constant 0 : index
    %c0_6 = arith.constant 0 : index
    %8 = vector.load %arg4[%c0_5, %c0_6] : memref<32x128xbf16, #tpu.memory_space<vmem>>, vector<32x128xbf16>
    %cst_7 = arith.constant dense<0.000000e+00> : vector<16x128xf32>
    %9 = tpu.matmul %7, %8, %cst_7 {dimension_numbers = #tpu.dot_dimension_numbers<[1], [0], [0], [1], [0, 0, 1, 1], [], []>} : vector<16x32xbf16>, vector<32x128xbf16>, vector<16x128xf32> -> vector<16x128xf32>
    %c0_8 = arith.constant 0 : index
    %c0_9 = arith.constant 0 : index
    %10 = vector.load %arg5[%c0_8, %c0_9] : memref<1x128xf32, #tpu.memory_space<vmem>>, vector<1x128xf32>
    %11 = vector.broadcast %10 : vector<1x128xf32> to vector<16x128xf32>
    %12 = arith.addf %9, %11 : vector<16x128xf32>
    %c0_10 = arith.constant 0 : index
    %c0_11 = arith.constant 0 : index
    %13 = vector.load %arg6[%c0_10, %c0_11] : memref<16x128xf32, #tpu.memory_space<vmem>>, vector<16x128xf32>
    tpu.vector_store %arg6[%c0_10, %c0_11], %12 {strides = array<i32>} : memref<16x128xf32, #tpu.memory_space<vmem>>, vector<16x128xf32>,
    return
  }
  func.func @transform_0(%arg0: i32) -> (i32, i32) {
    %c0_i32 = arith.constant 0 : i32
    %c0_i32_0 = arith.constant 0 : i32
    return %arg0, %c0_i32 : i32, i32
  }
  func.func @transform_1(%arg0: i32) -> (i32, i32) {
    %c0_i32 = arith.constant 0 : i32
    %c0_i32_0 = arith.constant 0 : i32
    %c0_i32_1 = arith.constant 0 : i32
    return %c0_i32, %c0_i32_0 : i32, i32
  }
  func.func @transform_2(%arg0: i32) -> (i32, i32) {
    %c0_i32 = arith.constant 0 : i32
    %c0_i32_0 = arith.constant 0 : i32
    %c0_i32_1 = arith.constant 0 : i32
    return %c0_i32, %c0_i32_0 : i32, i32
  }
  func.func @transform_3(%arg0: i32) -> (i32, i32) {
    %c0_i32 = arith.constant 0 : i32
    %c0_i32_0 = arith.constant 0 : i32
    %c0_i32_1 = arith.constant 0 : i32
    return %c0_i32, %c0_i32_0 : i32, i32
  }
  func.func @transform_4(%arg0: i32) -> (i32, i32) {
    %c0_i32 = arith.constant 0 : i32
    %c0_i32_0 = arith.constant 0 : i32
    %c0_i32_1 = arith.constant 0 : i32
    return %c0_i32, %c0_i32_0 : i32, i32
  }
  func.func @transform_5(%arg0: i32) -> (i32, i32) {
    %c0_i32 = arith.constant 0 : i32
    %c0_i32_0 = arith.constant 0 : i32
    return %arg0, %c0_i32 : i32, i32
  }
}

</mosaic_0001>

<llo_original>
// kernel: tpu_custom_call.1
$region0: #{tpu_custom_call.1}
  #allocation0 [shape = 'u32[]', space=smem, size = 0x4, offset = 0x4, fixed_abs, tag = 'smem constant byte address 0x4 - core index']
  #allocation1 [shape = 'u32[144,128]{1,0:T(1,128)}', space=vmem, size = 0x12000, scoped, tag = 'internal scratch']
  %s0 = inlined_call_operand.hbm [shape: bf16[16,32], index: 0, kind: input, shape index: {}]
  %s1 = inlined_call_operand.hbm [shape: bf16[32,32], index: 1, kind: input, shape index: {}]
  %s2 = inlined_call_operand.vmem [shape: f32[1,32], index: 2, kind: input, shape index: {}]
  %s3 = inlined_call_operand.hbm [shape: bf16[32,128], index: 3, kind: input, shape index: {}]
  %s4 = inlined_call_operand.vmem [shape: f32[1,128], index: 4, kind: input, shape index: {}]
  %s5 = inlined_call_operand.hbm [shape: f32[16,128], index: 5, kind: output, shape index: {}]
  %s6 = sld [smem:[#allocation0]]
  $region42: #{tpu_custom_call.1} parent=0
    _
  %s8 = ssub.s32 1, %s6
  %s9 = scalar_select 0, %s8, %s6
  $region1: #{tpu_custom_call.1} parent=0
    #allocation2 [shape = 'u8[4096]{0}', space=vmem, size = 0x1000, scoped, tag = 'input window, operand 0, single buffered']
    #allocation3 [shape = 's32[1]{0}', space=sflag, size = 0x4, scoped, tag = 'scoped memory for tpu_custom_call.1']
    #allocation4 [shape = 's32[1]{0}', space=sflag, size = 0x4, scoped, tag = 'scoped memory for tpu_custom_call.1']
    #allocation5 [shape = 'u8[8192]{0}', space=vmem, size = 0x2000, scoped, tag = 'input window, operand 1, single buffered']
    #allocation6 [shape = 's32[1]{0}', space=sflag, size = 0x4, scoped, tag = 'scoped memory for tpu_custom_call.1']
    #allocation7 [shape = 'u8[8192]{0}', space=vmem, size = 0x2000, scoped, tag = 'input window, operand 3, single buffered']
    #allocation8 [shape = 'u8[8192]{0}', space=vmem, size = 0x2000, scoped, tag = 'output window, operand 0, single buffered']
    %10 = vsyncpa [#allocation3], 0
    %11 = vsyncpa [#allocation6], 0
    %12 = vsyncpa [#allocation4], 0
    // Predicated region
    $region2: #{tpu_custom_call.1} parent=1 // pred_check
      _
    $region3: #{tpu_custom_call.1} parent=1 // pred_check_branch
      %14 = sbr.rel (0) target = $region5
    $region4: #{tpu_custom_call.1} parent=1 // pred_region
      %s16 = ssub.s32 128, 128
      %17 = vsyncadd [#allocation3], %s16
      %s18 = sshll.u32 [#allocation2], 4
      %s19 = int_to_ptr.vmem [resolvable:$true] %s18
      %24 = dma.hbm_to_vmem [thread:$0]  %s0, 128, %s19, [#allocation3], 64, 64, 4
    $region5: #{tpu_custom_call.1} parent=1 // pred_fallthru
      _
    // Predicated region
    $region6: #{tpu_custom_call.1} parent=1 // pred_check
      _
    $region7: #{tpu_custom_call.1} parent=1 // pred_check_branch
      %26 = sbr.rel (0) target = $region9
    $region8: #{tpu_custom_call.1} parent=1 // pred_region
      %s28 = ssub.s32 256, 256
      %29 = vsyncadd [#allocation6], %s28
      %s30 = sshll.u32 [#allocation5], 4
      %s31 = int_to_ptr.vmem [resolvable:$true] %s30
      %36 = dma.hbm_to_vmem [thread:$0]  %s1, 256, %s31, [#allocation6], 64, 64, 4
    $region9: #{tpu_custom_call.1} parent=1 // pred_fallthru
      _
    // Predicated region
    $region10: #{tpu_custom_call.1} parent=1 // pred_check
      _
    $region11: #{tpu_custom_call.1} parent=1 // pred_check_branch
      %38 = sbr.rel (0) target = $region13
    $region12: #{tpu_custom_call.1} parent=1 // pred_region
      _
    $region13: #{tpu_custom_call.1} parent=1 // pred_fallthru
      _
    // Predicated region
    $region14: #{tpu_custom_call.1} parent=1 // pred_check
      _
    $region15: #{tpu_custom_call.1} parent=1 // pred_check_branch
      %40 = sbr.rel (0) target = $region17
    $region16: #{tpu_custom_call.1} parent=1 // pred_region
      %s42 = ssub.s32 256, 256
      %43 = vsyncadd [#allocation6], %s42
      %s44 = sshll.u32 [#allocation7], 4
      %s45 = int_to_ptr.vmem [resolvable:$true] %s44
      %50 = dma.hbm_to_vmem [thread:$0]  %s3, 256, %s45, [#allocation6], 64, 64, 4
    $region17: #{tpu_custom_call.1} parent=1 // pred_fallthru
      _
    // Predicated region
    $region18: #{tpu_custom_call.1} parent=1 // pred_check
      _
    $region19: #{tpu_custom_call.1} parent=1 // pred_check_branch
      %52 = sbr.rel (0) target = $region21
    $region20: #{tpu_custom_call.1} parent=1 // pred_region
      _
    $region21: #{tpu_custom_call.1} parent=1 // pred_fallthru
      _
    // Predicated region
    $region22: #{tpu_custom_call.1} parent=1 // pred_check
      _
    $region23: #{tpu_custom_call.1} parent=1 // pred_check_branch
      %54 = sbr.rel (0) target = $region25
    $region24: #{tpu_custom_call.1} parent=1 // pred_region
      %55 = dma.done [#allocation3], 128
    $region25: #{tpu_custom_call.1} parent=1 // pred_fallthru
      _
    // Predicated region
    $region26: #{tpu_custom_call.1} parent=1 // pred_check
      _
    $region27: #{tpu_custom_call.1} parent=1 // pred_check_branch
      %57 = sbr.rel (0) target = $region29
    $region28: #{tpu_custom_call.1} parent=1 // pred_region
      %58 = dma.done [#allocation6], 256
    $region29: #{tpu_custom_call.1} parent=1 // pred_fallthru
      _
    // Predicated region
    $region30: #{tpu_custom_call.1} parent=1 // pred_check
      _
    $region31: #{tpu_custom_call.1} parent=1 // pred_check_branch
      %60 = sbr.rel (0) target = $region33
    $region32: #{tpu_custom_call.1} parent=1 // pred_region
      %61 = dma.done [#allocation6], 256
    $region33: #{tpu_custom_call.1} parent=1 // pred_fallthru
      _
    %v63 = vld [vmem:[#allocation2] sm:$0xf]
    %v64 = vld [vmem:[#allocation2 + $0x4] sm:$0xf]
    %v65 = vld [vmem:[#allocation5] sm:$0xf]
    %v66 = vld [vmem:[#allocation5 + $0x4] sm:$0xf]
    %v67 = vld [vmem:[#allocation5 + $0x8] sm:$0xf]
    %v68 = vld [vmem:[#allocation5 + $0xc] sm:$0xf]
    %v69 = vld [vmem:[%s2] sm:$0x1]
    %v71 = vlaneseq
    %v72 = vshrl.u32 %v71, 7
    %v73 = vsub.s32 0, %v72
    %v74 = vrot.slane %v69, %v73
    %v78 = vunpack.c.l.b16 %v63
    %v79 = vunpack.c.l.b16 %v64
    %v80 = vpack.c.b16 %v79, %v78
    %v85 = vunpack.c.l.b16 %v65
    %v86 = vunpack.c.l.b16 %v66
    %v87 = vunpack.c.l.b16 %v67
    %v88 = vunpack.c.l.b16 %v68
    %v89 = vpack.c.b16 %v86, %v85
    %v90 = vpack.c.b16 %v88, %v87
    %vm93 = vcmask 261120
    %v95 = vsel %vm93, %v80, 0
    %97 = vmatprep.subr.bf16.mxu0 0
    %98 = vmatpush1.bf16.msra.mxu0 %v89
    %99 = vmatprep.subr.bf16.mxu0 0
    %100 = vmatpush1.bf16.msra.mxu0 %v90
    %101 = vmatprep.subr.bf16.mxu0 0
    %102 = vmatpush1.bf16.msra.mxu0 0
    %103 = vmatprep.subr.bf16.mxu0 0
    %104 = vmatpush1.bf16.msra.mxu0 0
    %105 = vmatprep.subr.bf16.mxu0 0
    %106 = vmatpush1.bf16.msra.mxu0 0
    %107 = vmatprep.subr.bf16.mxu0 0
    %108 = vmatpush1.bf16.msra.mxu0 0
    %109 = vmatprep.subr.bf16.mxu0 0
    %110 = vmatpush1.bf16.msra.mxu0 0
    %111 = vmatprep.subr.bf16.mxu0 0
    %112 = vmatpush1.bf16.msra.mxu0 0
    %113 = vmatprep.subr.bf16.mxu0 0
    %114 = vmatpush1.bf16.msra.mxu0 0
    %115 = vmatprep.subr.bf16.mxu0 0
    %116 = vmatpush1.bf16.msra.mxu0 0
    %117 = vmatprep.subr.bf16.mxu0 0
    %118 = vmatpush1.bf16.msra.mxu0 0
    %119 = vmatprep.subr.bf16.mxu0 0
    %120 = vmatpush1.bf16.msra.mxu0 0
    %121 = vmatprep.subr.bf16.mxu0 0
    %122 = vmatpush1.bf16.msra.mxu0 0
    %123 = vmatprep.subr.bf16.mxu0 0
    %124 = vmatpush1.bf16.msra.mxu0 0
    %125 = vmatprep.subr.bf16.mxu0 0
    %126 = vmatpush1.bf16.msra.mxu0 0
    %127 = vmatprep.subr.bf16.mxu0 0
    %128 = vmatpush1.bf16.msra.mxu0 0
    %129 = vmatprep.mubr.bf16.mxu0 0
    %130 = vmatmul.mubr.bf16.gmra.mrb[0].mxu0 %v95
    %v131 = vpop.f32.mrb[0].mxu0
    %v132 = vadd.f32 %v74, %v131
    %v133 = vpop.f32.mrb[0].mxu0
    %v134 = vpop.f32.mrb[0].mxu0
    %v135 = vadd.f32 %v74, %v134
    %v136 = vpop.f32.mrb[0].mxu0
    %137 = vdwg.mxu0
    %v138 = vtanh.pop %v132
    %v139 = vtanh.pop %v135
    %v140 = vpack.c.bf16 %v139, %v138
    %v141 = vld [vmem:[#allocation7] sm:$0xf]
    %v142 = vld [vmem:[#allocation7 + $0x4] sm:$0xf]
    %v143 = vld [vmem:[#allocation7 + $0x8] sm:$0xf]
    %v144 = vld [vmem:[#allocation7 + $0xc] sm:$0xf]
    %v145 = vld [vmem:[%s4] sm:$0x1]
    %v147 = vlaneseq
    %v148 = vshrl.u32 %v147, 7
    %v149 = vsub.s32 0, %v148
    %v150 = vrot.slane %v145, %v149
    %v156 = vunpack.c.l.b16 %v141
    %v157 = vunpack.c.l.b16 %v142
    %v158 = vunpack.c.l.b16 %v143
    %v159 = vunpack.c.l.b16 %v144
    %v160 = vpack.c.b16 %v157, %v156
    %v161 = vpack.c.b16 %v159, %v158
    %v165 = vsel %vm93, %v140, 0
    %167 = vmatprep.subr.bf16.mxu0 0
    %168 = vmatpush1.bf16.msra.mxu0 %v160
    %169 = vmatprep.subr.bf16.mxu0 0
    %170 = vmatpush1.bf16.msra.mxu0 %v161
    %171 = vmatprep.subr.bf16.mxu0 0
    %172 = vmatpush1.bf16.msra.mxu0 0
    %173 = vmatprep.subr.bf16.mxu0 0
    %174 = vmatpush1.bf16.msra.mxu0 0
    %175 = vmatprep.subr.bf16.mxu0 0
    %176 = vmatpush1.bf16.msra.mxu0 0
    %177 = vmatprep.subr.bf16.mxu0 0
    %178 = vmatpush1.bf16.msra.mxu0 0
    %179 = vmatprep.subr.bf16.mxu0 0
    %180 = vmatpush1.bf16.msra.mxu0 0
    %181 = vmatprep.subr.bf16.mxu0 0
    %182 = vmatpush1.bf16.msra.mxu0 0
    %183 = vmatprep.subr.bf16.mxu0 0
    %184 = vmatpush1.bf16.msra.mxu0 0
    %185 = vmatprep.subr.bf16.mxu0 0
    %186 = vmatpush1.bf16.msra.mxu0 0
    %187 = vmatprep.subr.bf16.mxu0 0
    %188 = vmatpush1.bf16.msra.mxu0 0
    %189 = vmatprep.subr.bf16.mxu0 0
    %190 = vmatpush1.bf16.msra.mxu0 0
    %191 = vmatprep.subr.bf16.mxu0 0
    %192 = vmatpush1.bf16.msra.mxu0 0
    %193 = vmatprep.subr.bf16.mxu0 0
    %194 = vmatpush1.bf16.msra.mxu0 0
    %195 = vmatprep.subr.bf16.mxu0 0
    %196 = vmatpush1.bf16.msra.mxu0 0
    %197 = vmatprep.subr.bf16.mxu0 0
    %198 = vmatpush1.bf16.msra.mxu0 0
    %199 = vmatprep.mubr.bf16.mxu0 0
    %200 = vmatmul.mubr.bf16.gmra.mrb[0].mxu0 %v165
    %v201 = vpop.f32.mrb[0].mxu0
    %v202 = vadd.f32 %v150, %v201
    %v203 = vpop.f32.mrb[0].mxu0
    %v204 = vpop.f32.mrb[0].mxu0
    %v205 = vadd.f32 %v150, %v204
    %v206 = vpop.f32.mrb[0].mxu0
    %207 = vdwg.mxu0
    %208 = vst [vmem:[#allocation8] sm:$0xff] %v202
    %209 = vst [vmem:[#allocation8 + $0x8] sm:$0xff] %v205
    // Predicated region
    $region34: #{tpu_custom_call.1} parent=1 // pred_check
      _
    $region35: #{tpu_custom_call.1} parent=1 // pred_check_branch
      %211 = sbr.rel (0) target = $region37
    $region36: #{tpu_custom_call.1} parent=1 // pred_region
      %s213 = ssub.s32 256, 256
      %214 = vsyncadd [#allocation4], %s213
      %s215 = sshll.u32 [#allocation8], 4
      %s216 = int_to_ptr.vmem [resolvable:$true] %s215
      %221 = dma.vmem_to_hbm [thread:$0]  %s216, 256, %s5, [#allocation4], 128, 128, 8
    $region37: #{tpu_custom_call.1} parent=1 // pred_fallthru
      _
    // Predicated region
    $region38: #{tpu_custom_call.1} parent=1 // pred_check
      _
    $region39: #{tpu_custom_call.1} parent=1 // pred_check_branch
      %223 = sbr.rel (0) target = $region41
    $region40: #{tpu_custom_call.1} parent=1 // pred_region
      %224 = dma.done [#allocation4], 256
    $region41: #{tpu_custom_call.1} parent=1 // pred_fallthru
      _
    %225 = vsyncpa [#allocation3], 1
    %226 = vsyncpa [#allocation6], 1
    %227 = vsyncpa [#allocation4], 1

</llo_original>
